<compile_context>
chip_gen: v5e
topology: v5e:2x2
jax: 0.10.0
libtpu: 0.0.40
codegen_flags: <defaults>
</compile_context>

<pallas_src>
import functools

import jax
import jax.numpy as jnp
from jax import lax
from jax.experimental import pallas as pl
from jax.experimental.pallas import tpu as pltpu


def _affine_rows_kernel(x_ref, w_ref, b_ref, o_ref, *, C, tr):
    # x_ref/o_ref: (tr, tl) VMEM block; w_ref/b_ref: (C,) whole arrays in SMEM.
    i = pl.program_id(0)
    blk = x_ref.shape

    # Global row index of each element in this block; channel = row % C
    # (row r = n*C + c in the flattened (N*C, L) layout).
    rows = i * tr + lax.broadcasted_iota(jnp.int32, blk, 0)
    ch = rows % C

    scale = jnp.full(blk, w_ref[0], dtype=jnp.float32)
    offset = jnp.full(blk, b_ref[0], dtype=jnp.float32)
    for j in range(1, C):  # C is a tiny Python int (2); static unroll
        scale = jnp.where(ch == j, w_ref[j], scale)
        offset = jnp.where(ch == j, b_ref[j], offset)

    xv = x_ref[...].astype(jnp.float32)
    o_ref[...] = (xv * scale + offset).astype(o_ref.dtype)


def test_conv1d_forward(x, weight, bias, *, row_tile=512, lane_tile=1024):
    """x: (N, C, L); weight: (C, 1, 1) PyTorch grouped-conv layout; bias: (C,)."""
    N, C, L = x.shape
    R = N * C

    # Lane-dense 2D view: row r = n*C + c (pure reshape on contiguous NCL).
    x2d = x.reshape(R, L)

    # Raw per-channel params -> SMEM (tiny; 32-bit).
    w_c = weight.reshape(C).astype(jnp.float32)
    b_c = bias.reshape(C).astype(jnp.float32)

    # Tile selection: either the full dim (toy shapes) or an (8,128)-aligned
    # tile. Ragged edges are handled by Pallas (cdiv grid, masked writeback).
    tr = R if R <= row_tile else row_tile      # row_tile is a multiple of 8
    tl = L if L <= lane_tile else lane_tile    # lane_tile is a multiple of 128
    grid = (pl.cdiv(R, tr), pl.cdiv(L, tl))

    itemsize = jnp.dtype(x.dtype).itemsize
    cost = pl.CostEstimate(
        flops=2 * R * L,
        transcendentals=0,
        bytes_accessed=2 * R * L * itemsize + 2 * C * 4,
    )

    kernel = functools.partial(_affine_rows_kernel, C=C, tr=tr)

    out2d = pl.pallas_call(
        kernel,
        out_shape=jax.ShapeDtypeStruct((R, L), x.dtype),
        grid=grid,
        in_specs=[
            pl.BlockSpec((tr, tl), lambda i, j: (i, j)),
            pl.BlockSpec(memory_space=pltpu.MemorySpace.SMEM),
            pl.BlockSpec(memory_space=pltpu.MemorySpace.SMEM),
        ],
        out_specs=pl.BlockSpec((tr, tl), lambda i, j: (i, j)),
        compiler_params=pltpu.CompilerParams(
            dimension_semantics=("parallel", "parallel"),
        ),
        cost_estimate=cost,
    )(x2d, w_c, b_c)

    return out2d.reshape(N, C, L)


if __name__ == "__main__":
    key = jax.random.PRNGKey(0)
    kx, kb = jax.random.split(key)

    # Module implies NCL input with C=2; small toy length.
    N, C, L = 2, 2, 16
    x = jax.random.normal(kx, (N, C, L), dtype=jnp.float32)

    # Deterministic parameters per the module's init_weights.
    weight = jnp.zeros((C, 1, 1), dtype=jnp.float32)
    weight = weight.at[0, 0, 0].set(2.0)
    weight = weight.at[1, 0, 0].set(4.0)
    # PyTorch default bias ~ U(-1, 1) for fan_in=1; drawn deterministically here.
    bias = jax.random.uniform(kb, (C,), dtype=jnp.float32, minval=-1.0, maxval=1.0)

    out = jax.block_until_ready(test_conv1d_forward(x, weight, bias))

    # Reference check in plain JAX (grouped Conv1d, k=1).
    ref = x * weight.reshape(1, C, 1) + bias.reshape(1, C, 1)
    assert out.shape == (N, C, L)
    assert jnp.allclose(out, ref, atol=1e-6), "mismatch vs reference"

    print("KERNEL_OK")
</pallas_src>

<mosaic_0001>
module attributes {stable_mosaic.version = 11 : i64} {
  func.func @_affine_rows_kernel(%arg0: i32, %arg1: i32, %arg2: memref<4x16xf32, #tpu.memory_space<vmem>>, %arg3: memref<2xf32, #tpu.memory_space<smem>>, %arg4: memref<2xf32, #tpu.memory_space<smem>>, %arg5: memref<4x16xf32, #tpu.memory_space<vmem>>) attributes {dimension_semantics = [#tpu.dimension_semantics<parallel>, #tpu.dimension_semantics<parallel>], iteration_bounds = array<i64: 1, 1>, scalar_prefetch = 0 : i64, scratch_operands = 0 : i64, tpu.core_type = #tpu.core_type<tc>, window_params = [{transform_indices = @transform_0, window_bounds = array<i64: 4, 16>}, {transform_indices = @transform_1, window_bounds = array<i64: 2>}, {transform_indices = @transform_2, window_bounds = array<i64: 2>}, {transform_indices = @transform_3, window_bounds = array<i64: 4, 16>}]} {
    %c4_i32 = arith.constant 4 : i32
    %0 = arith.muli %arg0, %c4_i32 : i32
    %1 = tpu.iota {dimensions = array<i32: 0>} : vector<4x16xi32>
    %2 = vector.broadcast %0 : i32 to vector<4x16xi32>
    %3 = arith.addi %2, %1 : vector<4x16xi32>
    %c2_i32 = arith.constant 2 : i32
    %c0_i32 = arith.constant 0 : i32
    %4 = arith.cmpi eq, %c2_i32, %c0_i32 : i32
    %c1_i32 = arith.constant 1 : i32
    %5 = arith.select %4, %c1_i32, %c2_i32 : i32
    %6 = vector.broadcast %5 : i32 to vector<4x16xi32>
    %7 = arith.remsi %3, %6 : vector<4x16xi32>
    %c0_i32_0 = arith.constant 0 : i32
    %8 = vector.broadcast %c0_i32_0 : i32 to vector<4x16xi32>
    %9 = arith.cmpi ne, %7, %8 : vector<4x16xi32>
    %c0_i32_1 = arith.constant 0 : i32
    %10 = vector.broadcast %c0_i32_1 : i32 to vector<4x16xi32>
    %11 = arith.cmpi slt, %7, %10 : vector<4x16xi32>
    %c0_i32_2 = arith.constant 0 : i32
    %12 = arith.cmpi slt, %5, %c0_i32_2 : i32
    %13 = vector.broadcast %12 : i1 to vector<4x16xi1>
    %14 = vector.broadcast %13 : vector<4x16xi1> to vector<4x16xi1>
    %15 = arith.xori %11, %14 : vector<4x16xi1>
    %16 = arith.andi %15, %9 : vector<4x16xi1>
    %17 = vector.broadcast %5 : i32 to vector<4x16xi32>
    %18 = arith.addi %7, %17 : vector<4x16xi32>
    %19 = arith.select %16, %18, %7 : vector<4x16xi1>, vector<4x16xi32>
    %c0 = arith.constant 0 : index
    %20 = memref.load %arg3[%c0] : memref<2xf32, #tpu.memory_space<smem>>
    %21 = vector.broadcast %20 : f32 to vector<4x16xf32>
    %c0_3 = arith.constant 0 : index
    %22 = memref.load %arg4[%c0_3] : memref<2xf32, #tpu.memory_space<smem>>
    %23 = vector.broadcast %22 : f32 to vector<4x16xf32>
    %c1_i32_4 = arith.constant 1 : i32
    %24 = vector.broadcast %c1_i32_4 : i32 to vector<4x16xi32>
    %25 = arith.cmpi eq, %19, %24 : vector<4x16xi32>
    %c1 = arith.constant 1 : index
    %26 = memref.load %arg3[%c1] : memref<2xf32, #tpu.memory_space<smem>>
    %27 = vector.broadcast %26 : f32 to vector<4x16xf32>
    %28 = arith.select %25, %27, %21 : vector<4x16xi1>, vector<4x16xf32>
    %c1_i32_5 = arith.constant 1 : i32
    %29 = vector.broadcast %c1_i32_5 : i32 to vector<4x16xi32>
    %30 = arith.cmpi eq, %19, %29 : vector<4x16xi32>
    %c1_6 = arith.constant 1 : index
    %31 = memref.load %arg4[%c1_6] : memref<2xf32, #tpu.memory_space<smem>>
    %32 = vector.broadcast %31 : f32 to vector<4x16xf32>
    %33 = arith.select %30, %32, %23 : vector<4x16xi1>, vector<4x16xf32>
    %c0_7 = arith.constant 0 : index
    %c0_8 = arith.constant 0 : index
    %34 = vector.load %arg2[%c0_7, %c0_8] : memref<4x16xf32, #tpu.memory_space<vmem>>, vector<4x16xf32>
    %35 = arith.mulf %34, %28 : vector<4x16xf32>
    %36 = arith.addf %35, %33 : vector<4x16xf32>
    %c0_9 = arith.constant 0 : index
    %c0_10 = arith.constant 0 : index
    %37 = vector.load %arg5[%c0_9, %c0_10] : memref<4x16xf32, #tpu.memory_space<vmem>>, vector<4x16xf32>
    tpu.vector_store %arg5[%c0_9, %c0_10], %36 {strides = array<i32>} : memref<4x16xf32, #tpu.memory_space<vmem>>, vector<4x16xf32>,
    return
  }
  func.func @transform_0(%arg0: i32, %arg1: i32) -> (i32, i32) {
    %c0_i32 = arith.constant 0 : i32
    return %arg0, %arg1 : i32, i32
  }
  func.func @transform_1(%arg0: i32, %arg1: i32) -> i32 {
    %c0_i32 = arith.constant 0 : i32
    %c0_i32_0 = arith.constant 0 : i32
    return %c0_i32 : i32
  }
  func.func @transform_2(%arg0: i32, %arg1: i32) -> i32 {
    %c0_i32 = arith.constant 0 : i32
    %c0_i32_0 = arith.constant 0 : i32
    return %c0_i32 : i32
  }
  func.func @transform_3(%arg0: i32, %arg1: i32) -> (i32, i32) {
    %c0_i32 = arith.constant 0 : i32
    return %arg0, %arg1 : i32, i32
  }
}

</mosaic_0001>

<llo_original>
// kernel: tpu_custom_call.1
$region0: #{tpu_custom_call.1}
  #allocation0 [shape = 'u32[]', space=smem, size = 0x4, offset = 0x4, fixed_abs, tag = 'smem constant byte address 0x4 - core index']
  #allocation1 [shape = 'u32[72,128]{1,0:T(1,128)}', space=vmem, size = 0x9000, scoped, tag = 'internal scratch']
  %s0 = inlined_call_operand.hbm [shape: f32[4,16], index: 0, kind: input, shape index: {}]
  %s1 = inlined_call_operand.hbm [shape: f32[2], index: 1, kind: input, shape index: {}]
  %s2 = inlined_call_operand.vmem [shape: f32[2], index: 2, kind: input, shape index: {}]
  %s3 = inlined_call_operand.hbm [shape: f32[4,16], index: 3, kind: output, shape index: {}]
  %s4 = sld [smem:[#allocation0]]
  $region34: #{tpu_custom_call.1} parent=0
    _
  %s6 = ssub.s32 1, %s4
  %s7 = scalar_select 0, %s6, %s4
  $region1: #{tpu_custom_call.1} parent=0
    #allocation2 [shape = 'u8[2048]{0}', space=vmem, size = 0x800, scoped, tag = 'input window, operand 0, single buffered']
    #allocation3 [shape = 's32[1]{0}', space=sflag, size = 0x4, scoped, tag = 'scoped memory for tpu_custom_call.1']
    #allocation4 [shape = 's32[1]{0}', space=sflag, size = 0x4, scoped, tag = 'scoped memory for tpu_custom_call.1']
    #allocation5 [shape = 's32[1]{0}', space=sflag, size = 0x4, scoped, tag = 'scoped memory for tpu_custom_call.1']
    #allocation6 [shape = 's32[1]{0}', space=sflag, size = 0x4, scoped, tag = 'scoped memory for tpu_custom_call.1']
    #allocation7 [shape = 'u8[512]{0}', space=smem, size = 0x200, scoped, tag = 'input window, operand 1, single buffered']
    #allocation8 [shape = 'u8[512]{0}', space=smem, size = 0x200, scoped, tag = 'input window, operand 2, single buffered']
    #allocation9 [shape = 'u8[2048]{0}', space=vmem, size = 0x800, scoped, tag = 'output window, operand 0, single buffered']
    %8 = vsyncpa [#allocation3], 0
    %9 = vsyncpa [#allocation5], 0
    %10 = vsyncpa [#allocation6], 0
    %11 = vsyncpa [#allocation4], 0
    // Predicated region
    $region2: #{tpu_custom_call.1} parent=1 // pred_check
      _
    $region3: #{tpu_custom_call.1} parent=1 // pred_check_branch
      %13 = sbr.rel (0) target = $region5
    $region4: #{tpu_custom_call.1} parent=1 // pred_region
      %15 = vsyncadd [#allocation3], 0
      %s17 = sshll.u32 %s0, 4
      %s18 = int_to_ptr.hbm [resolvable:$true] %s17
      %s19 = sshll.u32 [#allocation2], 4
      %s20 = int_to_ptr.vmem [resolvable:$true] %s19
      %22 = dma.hbm_to_vmem [thread:$0]  %s18, 64, %s20, [#allocation3]
    $region5: #{tpu_custom_call.1} parent=1 // pred_fallthru
      _
    // Predicated region
    $region6: #{tpu_custom_call.1} parent=1 // pred_check
      _
    $region7: #{tpu_custom_call.1} parent=1 // pred_check_branch
      %24 = sbr.rel (0) target = $region9
    $region8: #{tpu_custom_call.1} parent=1 // pred_region
      %26 = vsyncadd [#allocation5], 0
      %s28 = sshll.u32 %s1, 4
      %s29 = int_to_ptr.hbm [resolvable:$true] %s28
      %31 = dma.hbm_to_smem %s29, 16, [#allocation7], [#allocation5]
    $region9: #{tpu_custom_call.1} parent=1 // pred_fallthru
      _
    // Predicated region
    $region10: #{tpu_custom_call.1} parent=1 // pred_check
      _
    $region11: #{tpu_custom_call.1} parent=1 // pred_check_branch
      %33 = sbr.rel (0) target = $region13
    $region12: #{tpu_custom_call.1} parent=1 // pred_region
      %35 = vsyncadd [#allocation6], 0
      %s37 = sshll.u32 %s2, 4
      %s38 = int_to_ptr.vmem [resolvable:$true] %s37
      %40 = dma.vmem_to_smem %s38, 16, [#allocation8], [#allocation6]
    $region13: #{tpu_custom_call.1} parent=1 // pred_fallthru
      _
    // Predicated region
    $region14: #{tpu_custom_call.1} parent=1 // pred_check
      _
    $region15: #{tpu_custom_call.1} parent=1 // pred_check_branch
      %42 = sbr.rel (0) target = $region17
    $region16: #{tpu_custom_call.1} parent=1 // pred_region
      %44 = dma.done [#allocation3], 64
    $region17: #{tpu_custom_call.1} parent=1 // pred_fallthru
      _
    // Predicated region
    $region18: #{tpu_custom_call.1} parent=1 // pred_check
      _
    $region19: #{tpu_custom_call.1} parent=1 // pred_check_branch
      %46 = sbr.rel (0) target = $region21
    $region20: #{tpu_custom_call.1} parent=1 // pred_region
      %48 = dma.done [#allocation5], 16
    $region21: #{tpu_custom_call.1} parent=1 // pred_fallthru
      _
    // Predicated region
    $region22: #{tpu_custom_call.1} parent=1 // pred_check
      _
    $region23: #{tpu_custom_call.1} parent=1 // pred_check_branch
      %50 = sbr.rel (0) target = $region25
    $region24: #{tpu_custom_call.1} parent=1 // pred_region
      %52 = dma.done [#allocation6], 16
    $region25: #{tpu_custom_call.1} parent=1 // pred_fallthru
      _
    %53 = sfence
    %s54 = smul.u32 0, 4
    %v55 = vlaneseq
    %v56 = vshrl.u32 %v55, 7
    %v57 = vstv %s54
    %v58 = vadd.s32 %v57, %v56
    %vm59 = vcmp.lt.s32.totalorder %v58, 0
    %v60 = vsub.s32 0, %v58
    %v61 = vsel %vm59, %v60, %v58
    %v62 = vshrl.u32 %v61, 1
    %v63 = vand.u32 %v61, 1
    %v64 = vsub.s32 0, %v63
    %v65 = vsel %vm59, %v64, %v63
    %vm66 = vcmp.ne.s32.totalorder %v65, 0
    %vm67 = vcmp.lt.s32.totalorder %v65, 0
    %vm68 = vmand %vm67, %vm66
    %v69 = vadd.s32 %v65, 2
    %v70 = vsel %vm68, %v69, %v65
    %s71 = sld [smem:[#allocation7]]
    %v72 = vstv %s71
    %s73 = sld [smem:[#allocation8]]
    %v74 = vstv %s73
    %vm75 = vcmp.eq.s32.totalorder %v70, 1
    %s76 = sld [smem:[#allocation7 + $0x1]]
    %v77 = vstv %s76
    %v78 = vsel %vm75, %v77, %v72
    %s79 = sld [smem:[#allocation8 + $0x1]]
    %v80 = vstv %s79
    %v81 = vsel %vm75, %v80, %v74
    %v82 = vld [vmem:[#allocation2] sm:$0xf]
    %v83 = vmul.f32 %v82, %v78
    %v84 = vadd.f32 %v83, %v81
    %vm85 = vcmask 125952
    %86 = vst.msk [vmem:[#allocation9] sm:$0xf] %vm85, %v84
    // Predicated region
    $region26: #{tpu_custom_call.1} parent=1 // pred_check
      _
    $region27: #{tpu_custom_call.1} parent=1 // pred_check_branch
      %88 = sbr.rel (0) target = $region29
    $region28: #{tpu_custom_call.1} parent=1 // pred_region
      %90 = vsyncadd [#allocation4], 0
      %s92 = sshll.u32 [#allocation9], 4
      %s93 = int_to_ptr.vmem [resolvable:$true] %s92
      %s94 = sshll.u32 %s3, 4
      %s95 = int_to_ptr.hbm [resolvable:$true] %s94
      %97 = dma.vmem_to_hbm [thread:$0]  %s93, 64, %s95, [#allocation4]
    $region29: #{tpu_custom_call.1} parent=1 // pred_fallthru
      _
    // Predicated region
    $region30: #{tpu_custom_call.1} parent=1 // pred_check
      _
    $region31: #{tpu_custom_call.1} parent=1 // pred_check_branch
      %99 = sbr.rel (0) target = $region33
    $region32: #{tpu_custom_call.1} parent=1 // pred_region
      %101 = dma.done [#allocation4], 64
    $region33: #{tpu_custom_call.1} parent=1 // pred_fallthru
      _
    %102 = vsyncpa [#allocation3], 1
    %103 = vsyncpa [#allocation4], 1
    %104 = vsyncpa [#allocation5], 1
    %105 = vsyncpa [#allocation6], 1

</llo_original>
